<compile_context>
chip_gen: v7x
topology: tpu7x:2x2x1
jax: 0.10.0
libtpu: 0.0.40
codegen_flags: <defaults>
</compile_context>

<pallas_src>
from typing import List, Tuple

import jax
import jax.numpy as jnp
from jax.experimental import pallas as pl
from jax.experimental.pallas import tpu as pltpu


# ----------------------------------------------------------------------------
# Minimal SphericalTensorType (multiplicities per rotation order l).
# ----------------------------------------------------------------------------
class SphericalTensorType:
    def __init__(self, multiplicities):
        self.multiplicities = tuple(int(c) for c in multiplicities)
        self.dim = sum(C * (2 * l + 1) for l, C in enumerate(self.multiplicities))

    def __eq__(self, other):
        return self.multiplicities == other.multiplicities

    @classmethod
    def concat_tensor_types(cls, *types) -> Tuple["SphericalTensorType", List[List[int]]]:
        max_l = max(len(t.multiplicities) for t in types) - 1

        def mult(t, l):
            return t.multiplicities[l] if l < len(t.multiplicities) else 0

        result_mult = [sum(mult(t, l) for t in types) for l in range(max_l + 1)]
        result = cls(result_mult)

        l_offsets = []
        off = 0
        for l, C in enumerate(result_mult):
            l_offsets.append(off)
            off += C * (2 * l + 1)

        concat_indices: List[List[int]] = []
        placed = [0] * (max_l + 1)
        for t in types:
            idxs: List[int] = []
            for l in range(len(t.multiplicities)):
                C = t.multiplicities[l]
                if C == 0:
                    continue
                start = l_offsets[l] + placed[l] * (2 * l + 1)
                idxs.extend(range(start, start + C * (2 * l + 1)))
                placed[l] += C
            concat_indices.append(idxs)
        return result, concat_indices


def build_copy_plan(indices: List[int]) -> List[Tuple[int, int, int]]:
    """Decompose a scatter index list into contiguous (out_start, in_start, length) runs."""
    plan = []
    start_pos = 0
    for pos in range(1, len(indices) + 1):
        if pos == len(indices) or indices[pos] != indices[pos - 1] + 1:
            plan.append((indices[start_pos], start_pos, pos - start_pos))
            start_pos = pos
    return plan


# ----------------------------------------------------------------------------
# Pallas kernel: scatter-concatenate along the (flattened) lane axis.
# All slice bounds are static Python ints -> pure static-slice copies.
# ----------------------------------------------------------------------------
def make_concat_kernel(lane_copy_plans, needs_zero_init):
    def kernel(*refs):
        out_ref = refs[-1]
        in_refs = refs[:-1]
        if needs_zero_init:
            # Only emitted if the static plans do NOT cover every output row
            # (never the case for concat_tensor_types-produced indices).
            out_ref[...] = jnp.zeros_like(out_ref)
        for k_ref, plan in zip(in_refs, lane_copy_plans):
            for out_lo, in_lo, n_lanes in plan:
                out_ref[:, out_lo:out_lo + n_lanes] = k_ref[:, in_lo:in_lo + n_lanes]
    return kernel


def concat_kernel_forward(kernel_tensors, concat_indices, type_out_dim,
                          Q_out, Q_in, num_P, type_in_dim):
    """kernel_tensors[i]: (Q_out, Q_in, num_P, dim_i, type_in_dim).

    Returns (Q_out, Q_in, num_P, type_out_dim, type_in_dim)."""
    B = Q_out * Q_in * num_P
    dtype = kernel_tensors[0].dtype
    itemsize = jnp.dtype(dtype).itemsize
    dims = [int(kt.shape[3]) for kt in kernel_tensors]

    # Native layout, pure reshape (NO transpose): (B, dim_i * type_in_dim).
    kt_flat = [kt.reshape(B, d * type_in_dim) for kt, d in zip(kernel_tensors, dims)]

    # Copy plans in type_out index space, scaled to lane units; static coverage check.
    covered = [False] * type_out_dim
    lane_plans = []
    for idxs in concat_indices:
        runs = build_copy_plan(list(idxs))
        for o, _, L in runs:
            for r in range(o, o + L):
                covered[r] = True
        lane_plans.append(
            [(o * type_in_dim, i * type_in_dim, L * type_in_dim) for o, i, L in runs]
        )
    needs_zero_init = not all(covered)  # skip zero-fill pass when fully covered

    out_lanes = type_out_dim * type_in_dim

    # Grid over B (sublane axis).  Block is either the full B (small cases) or a
    # multiple of 8 sublanes; lane axis always equals the full (flattened) extent.
    B_BLK = min(B, 1024)
    grid = (pl.cdiv(B, B_BLK),)

    # Explicit VMEM budget: double-buffered input + output blocks, with headroom.
    blk_bytes = B_BLK * (sum(dims) + type_out_dim) * type_in_dim * itemsize
    vmem_limit = max(2 * blk_bytes + (1 << 20), 4 << 20)
    vmem_limit = min(vmem_limit, 64 * 1024 * 1024)  # stay under v7x physical VMEM

    total_bytes = (sum(int(x.size) for x in kt_flat) + B * out_lanes) * itemsize

    kern = make_concat_kernel(lane_plans, needs_zero_init)

    out = pl.pallas_call(
        kern,
        out_shape=jax.ShapeDtypeStruct((B, out_lanes), dtype),
        grid_spec=pltpu.PrefetchScalarGridSpec(
            num_scalar_prefetch=0,
            grid=grid,
            in_specs=[
                pl.BlockSpec((B_BLK, d * type_in_dim), lambda i: (i, 0))
                for d in dims
            ],
            out_specs=pl.BlockSpec((B_BLK, out_lanes), lambda i: (i, 0)),
        ),
        compiler_params=pltpu.CompilerParams(
            dimension_semantics=("parallel",),
            vmem_limit_bytes=int(vmem_limit),
        ),
        cost_estimate=pl.CostEstimate(
            flops=0, transcendentals=0, bytes_accessed=int(total_bytes)
        ),
    )(*kt_flat)

    # Pure reshape back to the PyTorch layout (no transpose).
    return out.reshape(Q_out, Q_in, num_P, type_out_dim, type_in_dim)


# ----------------------------------------------------------------------------
# Pure-JAX reference mirroring the PyTorch forward exactly.
# ----------------------------------------------------------------------------
def concat_kernel_reference(kernel_tensors, concat_indices, type_out_dim,
                            Q_out, Q_in, num_P, type_in_dim):
    result = jnp.zeros((Q_out, Q_in, num_P, type_out_dim, type_in_dim), jnp.float32)
    for idxs, kt in zip(concat_indices, kernel_tensors):
        result = result.at[:, :, :, jnp.asarray(idxs), :].set(kt)
    return result


if __name__ == "__main__":
    key = jax.random.PRNGKey(0)

    # Small shapes consistent with the module.
    Q_out, Q_in = 2, 2
    num_P = 32                                     # P_diff_vectors: (32, 3)
    type_in = SphericalTensorType([2, 1])          # dim = 5
    kernel_type_a = SphericalTensorType([1, 1])    # dim = 4
    kernel_type_b = SphericalTensorType([1, 1])    # dim = 4
    type_out, concat_indices = SphericalTensorType.concat_tensor_types(
        kernel_type_a, kernel_type_b
    )                                              # dim = 8, interleaved indices

    key, k_pd = jax.random.split(key)
    P_diff_vectors = jax.random.normal(k_pd, (num_P, 3), jnp.float32)  # used for num_P only

    # Synthetic sub-kernel forward outputs (deterministic).
    kernel_tensors = []
    for kt_type in (kernel_type_a, kernel_type_b):
        key, k = jax.random.split(key)
        kernel_tensors.append(
            jax.random.normal(
                k, (Q_out, Q_in, num_P, kt_type.dim, type_in.dim), jnp.float32
            )
        )

    out = concat_kernel_forward(
        kernel_tensors, concat_indices, type_out.dim, Q_out, Q_in, num_P, type_in.dim
    )
    out = jax.block_until_ready(out)

    ref = concat_kernel_reference(
        kernel_tensors, concat_indices, type_out.dim, Q_out, Q_in, num_P, type_in.dim
    )

    assert out.shape == (Q_out, Q_in, num_P, type_out.dim, type_in.dim)
    assert jnp.allclose(out, ref, atol=0.0, rtol=0.0)
    print("KERNEL_OK")
</pallas_src>

<mosaic_0001>
module attributes {stable_mosaic.version = 11 : i64} {
  func.func @kernel(%arg0: i32, %arg1: memref<128x20xf32, #tpu.memory_space<vmem>>, %arg2: memref<128x20xf32, #tpu.memory_space<vmem>>, %arg3: memref<128x40xf32, #tpu.memory_space<vmem>>) attributes {dimension_semantics = [#tpu.dimension_semantics<parallel>], iteration_bounds = array<i64: 1>, scalar_prefetch = 0 : i64, scratch_operands = 0 : i64, tpu.core_type = #tpu.core_type<tc>, window_params = [{transform_indices = @transform_0, window_bounds = array<i64: 128, 20>}, {transform_indices = @transform_1, window_bounds = array<i64: 128, 20>}, {transform_indices = @transform_2, window_bounds = array<i64: 128, 40>}]} {
    %c0 = arith.constant 0 : index
    %c0_0 = arith.constant 0 : index
    %0 = vector.load %arg1[%c0, %c0_0] : memref<128x20xf32, #tpu.memory_space<vmem>>, vector<128x5xf32>
    %c0_1 = arith.constant 0 : index
    %c0_2 = arith.constant 0 : index
    %1 = vector.load %arg3[%c0_1, %c0_2] : memref<128x40xf32, #tpu.memory_space<vmem>>, vector<128x5xf32>
    tpu.vector_store %arg3[%c0_1, %c0_2], %0 {strides = array<i32>} : memref<128x40xf32, #tpu.memory_space<vmem>>, vector<128x5xf32>,
    %c0_3 = arith.constant 0 : index
    %c5 = arith.constant 5 : index
    %2 = vector.load %arg1[%c0_3, %c5] : memref<128x20xf32, #tpu.memory_space<vmem>>, vector<128x15xf32>
    %c0_4 = arith.constant 0 : index
    %c10 = arith.constant 10 : index
    %3 = vector.load %arg3[%c0_4, %c10] : memref<128x40xf32, #tpu.memory_space<vmem>>, vector<128x15xf32>
    tpu.vector_store %arg3[%c0_4, %c10], %2 {strides = array<i32>} : memref<128x40xf32, #tpu.memory_space<vmem>>, vector<128x15xf32>,
    %c0_5 = arith.constant 0 : index
    %c0_6 = arith.constant 0 : index
    %4 = vector.load %arg2[%c0_5, %c0_6] : memref<128x20xf32, #tpu.memory_space<vmem>>, vector<128x5xf32>
    %c0_7 = arith.constant 0 : index
    %c5_8 = arith.constant 5 : index
    %5 = vector.load %arg3[%c0_7, %c5_8] : memref<128x40xf32, #tpu.memory_space<vmem>>, vector<128x5xf32>
    tpu.vector_store %arg3[%c0_7, %c5_8], %4 {strides = array<i32>} : memref<128x40xf32, #tpu.memory_space<vmem>>, vector<128x5xf32>,
    %c0_9 = arith.constant 0 : index
    %c5_10 = arith.constant 5 : index
    %6 = vector.load %arg2[%c0_9, %c5_10] : memref<128x20xf32, #tpu.memory_space<vmem>>, vector<128x15xf32>
    %c0_11 = arith.constant 0 : index
    %c25 = arith.constant 25 : index
    %7 = vector.load %arg3[%c0_11, %c25] : memref<128x40xf32, #tpu.memory_space<vmem>>, vector<128x15xf32>
    tpu.vector_store %arg3[%c0_11, %c25], %6 {strides = array<i32>} : memref<128x40xf32, #tpu.memory_space<vmem>>, vector<128x15xf32>,
    return
  }
  func.func @transform_0(%arg0: i32) -> (i32, i32) {
    %c0_i32 = arith.constant 0 : i32
    %c0_i32_0 = arith.constant 0 : i32
    return %arg0, %c0_i32 : i32, i32
  }
  func.func @transform_1(%arg0: i32) -> (i32, i32) {
    %c0_i32 = arith.constant 0 : i32
    %c0_i32_0 = arith.constant 0 : i32
    return %arg0, %c0_i32 : i32, i32
  }
  func.func @transform_2(%arg0: i32) -> (i32, i32) {
    %c0_i32 = arith.constant 0 : i32
    %c0_i32_0 = arith.constant 0 : i32
    return %arg0, %c0_i32 : i32, i32
  }
}

</mosaic_0001>

<llo_original>
// kernel: tpu_custom_call.1
$region0: #{tpu_custom_call.1}
  #allocation0 [shape = 'u32[]', space=smem, size = 0x4, offset = 0x4, fixed_abs, tag = 'smem constant byte address 0x4 - core index']
  #allocation1 [shape = 'u32[144,128]{1,0:T(1,128)}', space=vmem, size = 0x12000, scoped, tag = 'internal scratch']
  %s0 = inlined_call_operand.vmem [shape: f32[128,20], index: 0, kind: input, shape index: {}]
  %s1 = inlined_call_operand.vmem [shape: f32[128,20], index: 1, kind: input, shape index: {}]
  %s2 = inlined_call_operand.vmem [shape: f32[128,40], index: 2, kind: output, shape index: {}]
  %s3 = sld [smem:[#allocation0]]
  $region18: #{tpu_custom_call.1} parent=0
    _
  %s5 = ssub.s32 1, %s3
  %s6 = scalar_select 0, %s5, %s3
  // Predicated region
  $region2: #{tpu_custom_call.1} parent=0 // pred_check
    _
  $region3: #{tpu_custom_call.1} parent=0 // pred_check_branch
    %8 = sbr.rel (0) target = $region5
  $region4: #{tpu_custom_call.1} parent=0 // pred_region
    _
  $region5: #{tpu_custom_call.1} parent=0 // pred_fallthru
    _
  // Predicated region
  $region6: #{tpu_custom_call.1} parent=0 // pred_check
    _
  $region7: #{tpu_custom_call.1} parent=0 // pred_check_branch
    %10 = sbr.rel (0) target = $region9
  $region8: #{tpu_custom_call.1} parent=0 // pred_region
    _
  $region9: #{tpu_custom_call.1} parent=0 // pred_fallthru
    _
  %v11 = vld [vmem:[%s0] sm:$0xff]
  %v12 = vld [vmem:[%s0 + $0x8] sm:$0xff]
  %v13 = vld [vmem:[%s0 + $0x10] sm:$0xff]
  %v14 = vld [vmem:[%s0 + $0x18] sm:$0xff]
  %v15 = vld [vmem:[%s0 + $0x20] sm:$0xff]
  %v16 = vld [vmem:[%s0 + $0x28] sm:$0xff]
  %v17 = vld [vmem:[%s0 + $0x30] sm:$0xff]
  %v18 = vld [vmem:[%s0 + $0x38] sm:$0xff]
  %v19 = vld [vmem:[%s0 + $0x40] sm:$0xff]
  %v20 = vld [vmem:[%s0 + $0x48] sm:$0xff]
  %v21 = vld [vmem:[%s0 + $0x50] sm:$0xff]
  %v22 = vld [vmem:[%s0 + $0x58] sm:$0xff]
  %v23 = vld [vmem:[%s0 + $0x60] sm:$0xff]
  %v24 = vld [vmem:[%s0 + $0x68] sm:$0xff]
  %v25 = vld [vmem:[%s0 + $0x70] sm:$0xff]
  %v26 = vld [vmem:[%s0 + $0x78] sm:$0xff]
  %vm27 = vcmask 39936
  %28 = vst.msk [vmem:[%s2] sm:$0xff] %vm27, %v11
  %29 = vst.msk [vmem:[%s2 + $0x8] sm:$0xff] %vm27, %v12
  %30 = vst.msk [vmem:[%s2 + $0x10] sm:$0xff] %vm27, %v13
  %31 = vst.msk [vmem:[%s2 + $0x18] sm:$0xff] %vm27, %v14
  %32 = vst.msk [vmem:[%s2 + $0x20] sm:$0xff] %vm27, %v15
  %33 = vst.msk [vmem:[%s2 + $0x28] sm:$0xff] %vm27, %v16
  %34 = vst.msk [vmem:[%s2 + $0x30] sm:$0xff] %vm27, %v17
  %35 = vst.msk [vmem:[%s2 + $0x38] sm:$0xff] %vm27, %v18
  %36 = vst.msk [vmem:[%s2 + $0x40] sm:$0xff] %vm27, %v19
  %37 = vst.msk [vmem:[%s2 + $0x48] sm:$0xff] %vm27, %v20
  %38 = vst.msk [vmem:[%s2 + $0x50] sm:$0xff] %vm27, %v21
  %39 = vst.msk [vmem:[%s2 + $0x58] sm:$0xff] %vm27, %v22
  %40 = vst.msk [vmem:[%s2 + $0x60] sm:$0xff] %vm27, %v23
  %41 = vst.msk [vmem:[%s2 + $0x68] sm:$0xff] %vm27, %v24
  %42 = vst.msk [vmem:[%s2 + $0x70] sm:$0xff] %vm27, %v25
  %43 = vst.msk [vmem:[%s2 + $0x78] sm:$0xff] %vm27, %v26
  %v44 = vld [vmem:[%s0] sm:$0xff]
  %v45 = vld [vmem:[%s0 + $0x8] sm:$0xff]
  %v46 = vld [vmem:[%s0 + $0x10] sm:$0xff]
  %v47 = vld [vmem:[%s0 + $0x18] sm:$0xff]
  %v48 = vld [vmem:[%s0 + $0x20] sm:$0xff]
  %v49 = vld [vmem:[%s0 + $0x28] sm:$0xff]
  %v50 = vld [vmem:[%s0 + $0x30] sm:$0xff]
  %v51 = vld [vmem:[%s0 + $0x38] sm:$0xff]
  %v52 = vld [vmem:[%s0 + $0x40] sm:$0xff]
  %v53 = vld [vmem:[%s0 + $0x48] sm:$0xff]
  %v54 = vld [vmem:[%s0 + $0x50] sm:$0xff]
  %v55 = vld [vmem:[%s0 + $0x58] sm:$0xff]
  %v56 = vld [vmem:[%s0 + $0x60] sm:$0xff]
  %v57 = vld [vmem:[%s0 + $0x68] sm:$0xff]
  %v58 = vld [vmem:[%s0 + $0x70] sm:$0xff]
  %v59 = vld [vmem:[%s0 + $0x78] sm:$0xff]
  %76 = vrot.lane.b32.xlu0 %v44, 5
  %v77 = vpop.permute.xlu0 %76
  %78 = vrot.lane.b32.xlu0 %v45, 5
  %v79 = vpop.permute.xlu0 %78
  %80 = vrot.lane.b32.xlu0 %v46, 5
  %v81 = vpop.permute.xlu0 %80
  %82 = vrot.lane.b32.xlu0 %v47, 5
  %v83 = vpop.permute.xlu0 %82
  %84 = vrot.lane.b32.xlu0 %v48, 5
  %v85 = vpop.permute.xlu0 %84
  %86 = vrot.lane.b32.xlu0 %v49, 5
  %v87 = vpop.permute.xlu0 %86
  %88 = vrot.lane.b32.xlu0 %v50, 5
  %v89 = vpop.permute.xlu0 %88
  %90 = vrot.lane.b32.xlu0 %v51, 5
  %v91 = vpop.permute.xlu0 %90
  %92 = vrot.lane.b32.xlu0 %v52, 5
  %v93 = vpop.permute.xlu0 %92
  %94 = vrot.lane.b32.xlu0 %v53, 5
  %v95 = vpop.permute.xlu0 %94
  %96 = vrot.lane.b32.xlu0 %v54, 5
  %v97 = vpop.permute.xlu0 %96
  %98 = vrot.lane.b32.xlu0 %v55, 5
  %v99 = vpop.permute.xlu0 %98
  %100 = vrot.lane.b32.xlu0 %v56, 5
  %v101 = vpop.permute.xlu0 %100
  %102 = vrot.lane.b32.xlu0 %v57, 5
  %v103 = vpop.permute.xlu0 %102
  %104 = vrot.lane.b32.xlu0 %v58, 5
  %v105 = vpop.permute.xlu0 %104
  %106 = vrot.lane.b32.xlu0 %v59, 5
  %v107 = vpop.permute.xlu0 %106
  %vm124 = vcmask 203856
  %125 = vst.msk [vmem:[%s2] sm:$0xff] %vm124, %v77
  %126 = vst.msk [vmem:[%s2 + $0x8] sm:$0xff] %vm124, %v79
  %127 = vst.msk [vmem:[%s2 + $0x10] sm:$0xff] %vm124, %v81
  %128 = vst.msk [vmem:[%s2 + $0x18] sm:$0xff] %vm124, %v83
  %129 = vst.msk [vmem:[%s2 + $0x20] sm:$0xff] %vm124, %v85
  %130 = vst.msk [vmem:[%s2 + $0x28] sm:$0xff] %vm124, %v87
  %131 = vst.msk [vmem:[%s2 + $0x30] sm:$0xff] %vm124, %v89
  %132 = vst.msk [vmem:[%s2 + $0x38] sm:$0xff] %vm124, %v91
  %133 = vst.msk [vmem:[%s2 + $0x40] sm:$0xff] %vm124, %v93
  %134 = vst.msk [vmem:[%s2 + $0x48] sm:$0xff] %vm124, %v95
  %135 = vst.msk [vmem:[%s2 + $0x50] sm:$0xff] %vm124, %v97
  %136 = vst.msk [vmem:[%s2 + $0x58] sm:$0xff] %vm124, %v99
  %137 = vst.msk [vmem:[%s2 + $0x60] sm:$0xff] %vm124, %v101
  %138 = vst.msk [vmem:[%s2 + $0x68] sm:$0xff] %vm124, %v103
  %139 = vst.msk [vmem:[%s2 + $0x70] sm:$0xff] %vm124, %v105
  %140 = vst.msk [vmem:[%s2 + $0x78] sm:$0xff] %vm124, %v107
  %v141 = vld [vmem:[%s1] sm:$0xff]
  %v142 = vld [vmem:[%s1 + $0x8] sm:$0xff]
  %v143 = vld [vmem:[%s1 + $0x10] sm:$0xff]
  %v144 = vld [vmem:[%s1 + $0x18] sm:$0xff]
  %v145 = vld [vmem:[%s1 + $0x20] sm:$0xff]
  %v146 = vld [vmem:[%s1 + $0x28] sm:$0xff]
  %v147 = vld [vmem:[%s1 + $0x30] sm:$0xff]
  %v148 = vld [vmem:[%s1 + $0x38] sm:$0xff]
  %v149 = vld [vmem:[%s1 + $0x40] sm:$0xff]
  %v150 = vld [vmem:[%s1 + $0x48] sm:$0xff]
  %v151 = vld [vmem:[%s1 + $0x50] sm:$0xff]
  %v152 = vld [vmem:[%s1 + $0x58] sm:$0xff]
  %v153 = vld [vmem:[%s1 + $0x60] sm:$0xff]
  %v154 = vld [vmem:[%s1 + $0x68] sm:$0xff]
  %v155 = vld [vmem:[%s1 + $0x70] sm:$0xff]
  %v156 = vld [vmem:[%s1 + $0x78] sm:$0xff]
  %173 = vrot.lane.b32.xlu0 %v141, 5
  %v174 = vpop.permute.xlu0 %173
  %175 = vrot.lane.b32.xlu0 %v142, 5
  %v176 = vpop.permute.xlu0 %175
  %177 = vrot.lane.b32.xlu0 %v143, 5
  %v178 = vpop.permute.xlu0 %177
  %179 = vrot.lane.b32.xlu0 %v144, 5
  %v180 = vpop.permute.xlu0 %179
  %181 = vrot.lane.b32.xlu0 %v145, 5
  %v182 = vpop.permute.xlu0 %181
  %183 = vrot.lane.b32.xlu0 %v146, 5
  %v184 = vpop.permute.xlu0 %183
  %185 = vrot.lane.b32.xlu0 %v147, 5
  %v186 = vpop.permute.xlu0 %185
  %187 = vrot.lane.b32.xlu0 %v148, 5
  %v188 = vpop.permute.xlu0 %187
  %189 = vrot.lane.b32.xlu0 %v149, 5
  %v190 = vpop.permute.xlu0 %189
  %191 = vrot.lane.b32.xlu0 %v150, 5
  %v192 = vpop.permute.xlu0 %191
  %193 = vrot.lane.b32.xlu0 %v151, 5
  %v194 = vpop.permute.xlu0 %193
  %195 = vrot.lane.b32.xlu0 %v152, 5
  %v196 = vpop.permute.xlu0 %195
  %197 = vrot.lane.b32.xlu0 %v153, 5
  %v198 = vpop.permute.xlu0 %197
  %199 = vrot.lane.b32.xlu0 %v154, 5
  %v200 = vpop.permute.xlu0 %199
  %201 = vrot.lane.b32.xlu0 %v155, 5
  %v202 = vpop.permute.xlu0 %201
  %203 = vrot.lane.b32.xlu0 %v156, 5
  %v204 = vpop.permute.xlu0 %203
  %vm221 = vcmask 80936
  %222 = vst.msk [vmem:[%s2] sm:$0xff] %vm221, %v174
  %223 = vst.msk [vmem:[%s2 + $0x8] sm:$0xff] %vm221, %v176
  %224 = vst.msk [vmem:[%s2 + $0x10] sm:$0xff] %vm221, %v178
  %225 = vst.msk [vmem:[%s2 + $0x18] sm:$0xff] %vm221, %v180
  %226 = vst.msk [vmem:[%s2 + $0x20] sm:$0xff] %vm221, %v182
  %227 = vst.msk [vmem:[%s2 + $0x28] sm:$0xff] %vm221, %v184
  %228 = vst.msk [vmem:[%s2 + $0x30] sm:$0xff] %vm221, %v186
  %229 = vst.msk [vmem:[%s2 + $0x38] sm:$0xff] %vm221, %v188
  %230 = vst.msk [vmem:[%s2 + $0x40] sm:$0xff] %vm221, %v190
  %231 = vst.msk [vmem:[%s2 + $0x48] sm:$0xff] %vm221, %v192
  %232 = vst.msk [vmem:[%s2 + $0x50] sm:$0xff] %vm221, %v194
  %233 = vst.msk [vmem:[%s2 + $0x58] sm:$0xff] %vm221, %v196
  %234 = vst.msk [vmem:[%s2 + $0x60] sm:$0xff] %vm221, %v198
  %235 = vst.msk [vmem:[%s2 + $0x68] sm:$0xff] %vm221, %v200
  %236 = vst.msk [vmem:[%s2 + $0x70] sm:$0xff] %vm221, %v202
  %237 = vst.msk [vmem:[%s2 + $0x78] sm:$0xff] %vm221, %v204
  %v238 = vld [vmem:[%s1] sm:$0xff]
  %v239 = vld [vmem:[%s1 + $0x8] sm:$0xff]
  %v240 = vld [vmem:[%s1 + $0x10] sm:$0xff]
  %v241 = vld [vmem:[%s1 + $0x18] sm:$0xff]
  %v242 = vld [vmem:[%s1 + $0x20] sm:$0xff]
  %v243 = vld [vmem:[%s1 + $0x28] sm:$0xff]
  %v244 = vld [vmem:[%s1 + $0x30] sm:$0xff]
  %v245 = vld [vmem:[%s1 + $0x38] sm:$0xff]
  %v246 = vld [vmem:[%s1 + $0x40] sm:$0xff]
  %v247 = vld [vmem:[%s1 + $0x48] sm:$0xff]
  %v248 = vld [vmem:[%s1 + $0x50] sm:$0xff]
  %v249 = vld [vmem:[%s1 + $0x58] sm:$0xff]
  %v250 = vld [vmem:[%s1 + $0x60] sm:$0xff]
  %v251 = vld [vmem:[%s1 + $0x68] sm:$0xff]
  %v252 = vld [vmem:[%s1 + $0x70] sm:$0xff]
  %v253 = vld [vmem:[%s1 + $0x78] sm:$0xff]
  %270 = vrot.lane.b32.xlu0 %v238, 20
  %v271 = vpop.permute.xlu0 %270
  %272 = vrot.lane.b32.xlu0 %v239, 20
  %v273 = vpop.permute.xlu0 %272
  %274 = vrot.lane.b32.xlu0 %v240, 20
  %v275 = vpop.permute.xlu0 %274
  %276 = vrot.lane.b32.xlu0 %v241, 20
  %v277 = vpop.permute.xlu0 %276
  %278 = vrot.lane.b32.xlu0 %v242, 20
  %v279 = vpop.permute.xlu0 %278
  %280 = vrot.lane.b32.xlu0 %v243, 20
  %v281 = vpop.permute.xlu0 %280
  %282 = vrot.lane.b32.xlu0 %v244, 20
  %v283 = vpop.permute.xlu0 %282
  %284 = vrot.lane.b32.xlu0 %v245, 20
  %v285 = vpop.permute.xlu0 %284
  %286 = vrot.lane.b32.xlu0 %v246, 20
  %v287 = vpop.permute.xlu0 %286
  %288 = vrot.lane.b32.xlu0 %v247, 20
  %v289 = vpop.permute.xlu0 %288
  %290 = vrot.lane.b32.xlu0 %v248, 20
  %v291 = vpop.permute.xlu0 %290
  %292 = vrot.lane.b32.xlu0 %v249, 20
  %v293 = vpop.permute.xlu0 %292
  %294 = vrot.lane.b32.xlu0 %v250, 20
  %v295 = vpop.permute.xlu0 %294
  %296 = vrot.lane.b32.xlu0 %v251, 20
  %v297 = vpop.permute.xlu0 %296
  %298 = vrot.lane.b32.xlu0 %v252, 20
  %v299 = vpop.permute.xlu0 %298
  %300 = vrot.lane.b32.xlu0 %v253, 20
  %v301 = vpop.permute.xlu0 %300
  %vm318 = vcmask 326856
  %319 = vst.msk [vmem:[%s2] sm:$0xff] %vm318, %v271
  %320 = vst.msk [vmem:[%s2 + $0x8] sm:$0xff] %vm318, %v273
  %321 = vst.msk [vmem:[%s2 + $0x10] sm:$0xff] %vm318, %v275
  %322 = vst.msk [vmem:[%s2 + $0x18] sm:$0xff] %vm318, %v277
  %323 = vst.msk [vmem:[%s2 + $0x20] sm:$0xff] %vm318, %v279
  %324 = vst.msk [vmem:[%s2 + $0x28] sm:$0xff] %vm318, %v281
  %325 = vst.msk [vmem:[%s2 + $0x30] sm:$0xff] %vm318, %v283
  %326 = vst.msk [vmem:[%s2 + $0x38] sm:$0xff] %vm318, %v285
  %327 = vst.msk [vmem:[%s2 + $0x40] sm:$0xff] %vm318, %v287
  %328 = vst.msk [vmem:[%s2 + $0x48] sm:$0xff] %vm318, %v289
  %329 = vst.msk [vmem:[%s2 + $0x50] sm:$0xff] %vm318, %v291
  %330 = vst.msk [vmem:[%s2 + $0x58] sm:$0xff] %vm318, %v293
  %331 = vst.msk [vmem:[%s2 + $0x60] sm:$0xff] %vm318, %v295
  %332 = vst.msk [vmem:[%s2 + $0x68] sm:$0xff] %vm318, %v297
  %333 = vst.msk [vmem:[%s2 + $0x70] sm:$0xff] %vm318, %v299
  %334 = vst.msk [vmem:[%s2 + $0x78] sm:$0xff] %vm318, %v301
  // Predicated region
  $region10: #{tpu_custom_call.1} parent=0 // pred_check
    _
  $region11: #{tpu_custom_call.1} parent=0 // pred_check_branch
    %336 = sbr.rel (0) target = $region13
  $region12: #{tpu_custom_call.1} parent=0 // pred_region
    _
  $region13: #{tpu_custom_call.1} parent=0 // pred_fallthru
    _
  // Predicated region
  $region14: #{tpu_custom_call.1} parent=0 // pred_check
    _
  $region15: #{tpu_custom_call.1} parent=0 // pred_check_branch
    %338 = sbr.rel (0) target = $region17
  $region16: #{tpu_custom_call.1} parent=0 // pred_region
    _
  $region17: #{tpu_custom_call.1} parent=0 // pred_fallthru
    _

</llo_original>
